<compile_context>
chip_gen: v7x
topology: tpu7x:2x2x1
jax: 0.10.0
libtpu: 0.0.40
codegen_flags: <defaults>
</compile_context>

<pallas_src>
import jax
import jax.numpy as jnp
from jax.experimental import pallas as pl
from jax.experimental.pallas import tpu as pltpu

H = 50      # logical hidden width (matches nn.Linear(2, 50))
HP = 64     # padded hidden width (multiple of 8 sublanes)


def _round_up(x, m):
    return ((x + m - 1) // m) * m


def mlp_kernel(xT_ref, w1_ref, b1_ref, w2_ref, b2_ref, w3_ref, b3_ref, o_ref):
    # xT_ref: [2, tb]   w1: [HP, 2]  b1: [HP, 1]
    # w2: [HP, HP]      b2: [HP, 1]
    # w3: [1, HP]       b3: [1, 1]   o: [1, tb]
    xT = xT_ref[...]
    x0 = xT[0:1, :]                                   # [1, tb]
    x1 = xT[1:2, :]                                   # [1, tb]

    # Layer 1 on the VPU: K=2 contraction as two broadcast FMAs.
    w1 = w1_ref[...]                                  # [HP, 2]
    h1 = w1[:, 0:1] * x0 + w1[:, 1:2] * x1 + b1_ref[...]   # [HP, tb]
    h1 = jnp.maximum(h1, 0.0)

    # Layer 2 on the MXU: [HP, HP] @ [HP, tb], f32 accumulation.
    h2 = jnp.dot(w2_ref[...], h1, preferred_element_type=jnp.float32)
    h2 = jnp.maximum(h2 + b2_ref[...], 0.0)           # [HP, tb]

    # Layer 3 (single output row): VPU multiply + sublane (XLU) reduce.
    w3 = w3_ref[...]                                  # [1, HP]
    y = jnp.sum(w3.T * h2, axis=0, keepdims=True) + b3_ref[...]   # [1, tb]

    o_ref[...] = y.astype(o_ref.dtype)


def _pad_params(params):
    """Zero-pad PyTorch-layout params to the HP=64 hidden width."""
    f32 = jnp.float32
    w1 = params["w1"].astype(f32)   # [50, 2]
    b1 = params["b1"].astype(f32)   # [50]
    w2 = params["w2"].astype(f32)   # [50, 50]
    b2 = params["b2"].astype(f32)   # [50]
    w3 = params["w3"].astype(f32)   # [1, 50]
    b3 = params["b3"].astype(f32)   # [1]

    w1p = jnp.zeros((HP, 2), f32).at[:H, :].set(w1)
    b1p = jnp.zeros((HP, 1), f32).at[:H, 0].set(b1)
    w2p = jnp.zeros((HP, HP), f32).at[:H, :H].set(w2)
    b2p = jnp.zeros((HP, 1), f32).at[:H, 0].set(b2)
    w3p = jnp.zeros((1, HP), f32).at[:, :H].set(w3)
    b3p = b3.reshape(1, 1)
    return w1p, b1p, w2p, b2p, w3p, b3p


def poisson_solver_forward(x, params, *, batch_tile=512):
    """x: [B, 2] float32, params in PyTorch [out, in] layout. Returns [B, 1]."""
    B, Fin = x.shape
    assert Fin == 2

    # Lane-dense batch tile: multiple of 128, shrunk for tiny batches so we
    # don't pad a handful of rows out to 512. Sweep 512-2048 for production
    # batches (multiple of 256 on v6e/v7x to fill both MXU passes).
    tb = min(_round_up(batch_tile, 128), _round_up(B, 128))
    B_pad = _round_up(B, tb)

    # Batch on the lane axis: feed X^T, zero-pad trailing rows.
    xT = jnp.zeros((2, B_pad), jnp.float32).at[:, :B].set(x.astype(jnp.float32).T)

    w1p, b1p, w2p, b2p, w3p, b3p = _pad_params(params)

    grid = (B_pad // tb,)
    # Weights/biases: same (full) block every grid step; only batch is tiled.
    full = lambda shape: pl.BlockSpec(shape, lambda i: (0, 0))

    out = pl.pallas_call(
        mlp_kernel,
        out_shape=jax.ShapeDtypeStruct((1, B_pad), jnp.float32),
        grid_spec=pltpu.PrefetchScalarGridSpec(
            num_scalar_prefetch=0,
            grid=grid,
            in_specs=[
                pl.BlockSpec((2, tb), lambda i: (0, i)),   # X^T batch tile
                full(w1p.shape), full(b1p.shape),
                full(w2p.shape), full(b2p.shape),
                full(w3p.shape), full(b3p.shape),
            ],
            out_specs=pl.BlockSpec((1, tb), lambda i: (0, i)),
        ),
        compiler_params=pltpu.CompilerParams(
            dimension_semantics=("parallel",),
        ),
    )(xT, w1p, b1p, w2p, b2p, w3p, b3p)

    # Back to the module's [B, 1] output layout.
    return out[0, :B].reshape(B, 1)


def init_params(key):
    """Deterministic init mirroring nn.Linear default (uniform +/- 1/sqrt(fan_in)),
    weights kept in PyTorch [out_features, in_features] layout."""
    k1, k2, k3, k4, k5, k6 = jax.random.split(key, 6)

    def lin(kw, kb, fan_in, fan_out):
        bound = 1.0 / jnp.sqrt(fan_in)
        w = jax.random.uniform(kw, (fan_out, fan_in), jnp.float32, -bound, bound)
        b = jax.random.uniform(kb, (fan_out,), jnp.float32, -bound, bound)
        return w, b

    w1, b1 = lin(k1, k2, 2, 50)
    w2, b2 = lin(k3, k4, 50, 50)
    w3, b3 = lin(k5, k6, 50, 1)
    return dict(w1=w1, b1=b1, w2=w2, b2=b2, w3=w3, b3=b3)


def reference_forward(x, p):
    h1 = jnp.maximum(x @ p["w1"].T + p["b1"], 0.0)
    h2 = jnp.maximum(h1 @ p["w2"].T + p["b2"], 0.0)
    return h2 @ p["w3"].T + p["b3"]


if __name__ == "__main__":
    key = jax.random.PRNGKey(0)
    kp, kx1, kx2 = jax.random.split(key, 3)
    params = init_params(kp)

    # Small batch of (x, y) coordinate pairs, consistent with the module's forward.
    B = 8
    x_small = jax.random.uniform(kx1, (B, 2), jnp.float32)
    out_small = jax.block_until_ready(poisson_solver_forward(x_small, params))
    ref_small = reference_forward(x_small, params)
    assert out_small.shape == (B, 1), out_small.shape
    assert jnp.allclose(out_small, ref_small, atol=1e-5, rtol=1e-5), "mismatch (B=8)"

    # Non-tile-multiple batch: exercises padding + multi-step parallel grid.
    B2 = 300
    x_med = jax.random.uniform(kx2, (B2, 2), jnp.float32)
    out_med = jax.block_until_ready(
        poisson_solver_forward(x_med, params, batch_tile=128))
    ref_med = reference_forward(x_med, params)
    assert out_med.shape == (B2, 1), out_med.shape
    assert jnp.allclose(out_med, ref_med, atol=1e-5, rtol=1e-5), "mismatch (B=300)"

    print("KERNEL_OK")
</pallas_src>

<mosaic_0001>
module attributes {stable_mosaic.version = 11 : i64} {
  func.func @mlp_kernel(%arg0: i32, %arg1: memref<2x128xf32, #tpu.memory_space<vmem>>, %arg2: memref<64x2xf32, #tpu.memory_space<vmem>>, %arg3: memref<64x1xf32, #tpu.memory_space<vmem>>, %arg4: memref<64x64xf32, #tpu.memory_space<vmem>>, %arg5: memref<64x1xf32, #tpu.memory_space<vmem>>, %arg6: memref<1x64xf32, #tpu.memory_space<vmem>>, %arg7: memref<1x1xf32, #tpu.memory_space<vmem>>, %arg8: memref<1x128xf32, #tpu.memory_space<vmem>>) attributes {dimension_semantics = [#tpu.dimension_semantics<parallel>], iteration_bounds = array<i64: 1>, scalar_prefetch = 0 : i64, scratch_operands = 0 : i64, tpu.core_type = #tpu.core_type<tc>, window_params = [{transform_indices = @transform_0, window_bounds = array<i64: 2, 128>}, {pipeline_mode = #tpu.pipeline_mode<synchronous>, transform_indices = @transform_1, window_bounds = array<i64: 64, 2>}, {pipeline_mode = #tpu.pipeline_mode<synchronous>, transform_indices = @transform_2, window_bounds = array<i64: 64, 1>}, {pipeline_mode = #tpu.pipeline_mode<synchronous>, transform_indices = @transform_3, window_bounds = array<i64: 64, 64>}, {pipeline_mode = #tpu.pipeline_mode<synchronous>, transform_indices = @transform_4, window_bounds = array<i64: 64, 1>}, {pipeline_mode = #tpu.pipeline_mode<synchronous>, transform_indices = @transform_5, window_bounds = array<i64: 1, 64>}, {pipeline_mode = #tpu.pipeline_mode<synchronous>, transform_indices = @transform_6, window_bounds = array<i64: 1, 1>}, {transform_indices = @transform_7, window_bounds = array<i64: 1, 128>}]} {
    %c0 = arith.constant 0 : index
    %c0_0 = arith.constant 0 : index
    %0 = vector.load %arg1[%c0, %c0_0] : memref<2x128xf32, #tpu.memory_space<vmem>>, vector<2x128xf32>
    %1 = vector.extract_strided_slice %0 {offsets = [0, 0], sizes = [1, 128], strides = [1, 1]} : vector<2x128xf32> to vector<1x128xf32>
    %2 = vector.extract_strided_slice %0 {offsets = [1, 0], sizes = [1, 128], strides = [1, 1]} : vector<2x128xf32> to vector<1x128xf32>
    %c0_1 = arith.constant 0 : index
    %c0_2 = arith.constant 0 : index
    %3 = vector.load %arg2[%c0_1, %c0_2] : memref<64x2xf32, #tpu.memory_space<vmem>>, vector<64x2xf32>
    %4 = vector.extract_strided_slice %3 {offsets = [0, 0], sizes = [64, 1], strides = [1, 1]} : vector<64x2xf32> to vector<64x1xf32>
    %5 = vector.broadcast %4 : vector<64x1xf32> to vector<64x128xf32>
    %6 = vector.broadcast %1 : vector<1x128xf32> to vector<64x128xf32>
    %7 = arith.mulf %5, %6 : vector<64x128xf32>
    %8 = vector.extract_strided_slice %3 {offsets = [0, 1], sizes = [64, 1], strides = [1, 1]} : vector<64x2xf32> to vector<64x1xf32>
    %9 = vector.broadcast %8 : vector<64x1xf32> to vector<64x128xf32>
    %10 = vector.broadcast %2 : vector<1x128xf32> to vector<64x128xf32>
    %11 = arith.mulf %9, %10 : vector<64x128xf32>
    %12 = arith.addf %7, %11 : vector<64x128xf32>
    %c0_3 = arith.constant 0 : index
    %c0_4 = arith.constant 0 : index
    %13 = vector.load %arg3[%c0_3, %c0_4] : memref<64x1xf32, #tpu.memory_space<vmem>>, vector<64x1xf32>
    %14 = vector.broadcast %13 : vector<64x1xf32> to vector<64x128xf32>
    %15 = arith.addf %12, %14 : vector<64x128xf32>
    %cst = arith.constant 0.000000e+00 : f32
    %16 = vector.broadcast %cst : f32 to vector<64x128xf32>
    %17 = arith.maximumf %15, %16 : vector<64x128xf32>
    %c0_5 = arith.constant 0 : index
    %c0_6 = arith.constant 0 : index
    %18 = vector.load %arg4[%c0_5, %c0_6] : memref<64x64xf32, #tpu.memory_space<vmem>>, vector<64x64xf32>
    %cst_7 = arith.constant dense<0.000000e+00> : vector<64x128xf32>
    %19 = tpu.matmul %18, %17, %cst_7 {dimension_numbers = #tpu.dot_dimension_numbers<[1], [0], [0], [1], [0, 0, 1, 1], [], []>} : vector<64x64xf32>, vector<64x128xf32>, vector<64x128xf32> -> vector<64x128xf32>
    %c0_8 = arith.constant 0 : index
    %c0_9 = arith.constant 0 : index
    %20 = vector.load %arg5[%c0_8, %c0_9] : memref<64x1xf32, #tpu.memory_space<vmem>>, vector<64x1xf32>
    %21 = vector.broadcast %20 : vector<64x1xf32> to vector<64x128xf32>
    %22 = arith.addf %19, %21 : vector<64x128xf32>
    %cst_10 = arith.constant 0.000000e+00 : f32
    %23 = vector.broadcast %cst_10 : f32 to vector<64x128xf32>
    %24 = arith.maximumf %22, %23 : vector<64x128xf32>
    %c0_11 = arith.constant 0 : index
    %c0_12 = arith.constant 0 : index
    %25 = vector.load %arg6[%c0_11, %c0_12] : memref<1x64xf32, #tpu.memory_space<vmem>>, vector<1x64xf32>
    %26 = tpu.transpose %25, [1, 0] : vector<1x64xf32> -> vector<64x1xf32>
    %27 = vector.broadcast %26 : vector<64x1xf32> to vector<64x128xf32>
    %28 = arith.mulf %27, %24 : vector<64x128xf32>
    %cst_13 = arith.constant dense<0.000000e+00> : vector<128xf32>
    %29 = vector.multi_reduction <add>, %28, %cst_13 [0] : vector<64x128xf32> to vector<128xf32>
    %30 = vector.shape_cast %29 : vector<128xf32> to vector<1x128xf32>
    %c0_14 = arith.constant 0 : index
    %c0_15 = arith.constant 0 : index
    %31 = vector.load %arg7[%c0_14, %c0_15] : memref<1x1xf32, #tpu.memory_space<vmem>>, vector<1x1xf32>
    %32 = vector.broadcast %31 : vector<1x1xf32> to vector<1x128xf32>
    %33 = arith.addf %30, %32 : vector<1x128xf32>
    %c0_16 = arith.constant 0 : index
    %c0_17 = arith.constant 0 : index
    %34 = vector.load %arg8[%c0_16, %c0_17] : memref<1x128xf32, #tpu.memory_space<vmem>>, vector<1x128xf32>
    tpu.vector_store %arg8[%c0_16, %c0_17], %33 {strides = array<i32>} : memref<1x128xf32, #tpu.memory_space<vmem>>, vector<1x128xf32>,
    return
  }
  func.func @transform_0(%arg0: i32) -> (i32, i32) {
    %c0_i32 = arith.constant 0 : i32
    %c0_i32_0 = arith.constant 0 : i32
    return %c0_i32, %arg0 : i32, i32
  }
  func.func @transform_1(%arg0: i32) -> (i32, i32) {
    %c0_i32 = arith.constant 0 : i32
    %c0_i32_0 = arith.constant 0 : i32
    %c0_i32_1 = arith.constant 0 : i32
    return %c0_i32, %c0_i32_0 : i32, i32
  }
  func.func @transform_2(%arg0: i32) -> (i32, i32) {
    %c0_i32 = arith.constant 0 : i32
    %c0_i32_0 = arith.constant 0 : i32
    %c0_i32_1 = arith.constant 0 : i32
    return %c0_i32, %c0_i32_0 : i32, i32
  }
  func.func @transform_3(%arg0: i32) -> (i32, i32) {
    %c0_i32 = arith.constant 0 : i32
    %c0_i32_0 = arith.constant 0 : i32
    %c0_i32_1 = arith.constant 0 : i32
    return %c0_i32, %c0_i32_0 : i32, i32
  }
  func.func @transform_4(%arg0: i32) -> (i32, i32) {
    %c0_i32 = arith.constant 0 : i32
    %c0_i32_0 = arith.constant 0 : i32
    %c0_i32_1 = arith.constant 0 : i32
    return %c0_i32, %c0_i32_0 : i32, i32
  }
  func.func @transform_5(%arg0: i32) -> (i32, i32) {
    %c0_i32 = arith.constant 0 : i32
    %c0_i32_0 = arith.constant 0 : i32
    %c0_i32_1 = arith.constant 0 : i32
    return %c0_i32, %c0_i32_0 : i32, i32
  }
  func.func @transform_6(%arg0: i32) -> (i32, i32) {
    %c0_i32 = arith.constant 0 : i32
    %c0_i32_0 = arith.constant 0 : i32
    %c0_i32_1 = arith.constant 0 : i32
    return %c0_i32, %c0_i32_0 : i32, i32
  }
  func.func @transform_7(%arg0: i32) -> (i32, i32) {
    %c0_i32 = arith.constant 0 : i32
    %c0_i32_0 = arith.constant 0 : i32
    return %c0_i32, %arg0 : i32, i32
  }
}

</mosaic_0001>

<llo_original>
// kernel: tpu_custom_call.1
$region0: #{tpu_custom_call.1}
  #allocation0 [shape = 'u32[]', space=smem, size = 0x4, offset = 0x4, fixed_abs, tag = 'smem constant byte address 0x4 - core index']
  #allocation1 [shape = 'u32[144,128]{1,0:T(1,128)}', space=vmem, size = 0x12000, scoped, tag = 'internal scratch']
  #allocation2 [shape = 'f32[1,1]{1,0:T(1,128)S(1)}', space=vmem, size = 0x200, scoped, tag = 'scoped memory for tpu_custom_call.1']
  %s0 = inlined_call_operand.vmem [shape: f32[2,128], index: 0, kind: input, shape index: {}]
  %s1 = inlined_call_operand.vmem [shape: f32[64,2], index: 1, kind: input, shape index: {}]
  %s2 = inlined_call_operand.vmem [shape: f32[64,1], index: 2, kind: input, shape index: {}]
  %s3 = inlined_call_operand.vmem [shape: f32[64,64], index: 3, kind: input, shape index: {}]
  %s4 = inlined_call_operand.vmem [shape: f32[64,1], index: 4, kind: input, shape index: {}]
  %s5 = inlined_call_operand.vmem [shape: f32[1,64], index: 5, kind: input, shape index: {}]
  %s6 = inlined_call_operand.<no memory space> [shape: f32[1,1], index: 6, kind: input, shape index: {}]
  %s7 = inlined_call_operand.hbm [shape: f32[1,128], index: 7, kind: output, shape index: {}]
  %s8 = sld [smem:[#allocation0]]
  $region38: #{tpu_custom_call.1} parent=0
    _
  %s10 = ssub.s32 1, %s8
  %s11 = scalar_select 0, %s10, %s8
  %v12 = vstv %s6
  %13 = vst [vmem:[#allocation2] sm:$0x1] %v12
  $region1: #{tpu_custom_call.1} parent=0
    #allocation3 [shape = 'u8[512]{0}', space=vmem, size = 0x400, scoped, tag = 'output window, operand 0, single buffered']
    #allocation4 [shape = 's32[1]{0}', space=sflag, size = 0x4, scoped, tag = 'scoped memory for tpu_custom_call.1']
    %14 = vsyncpa [#allocation4], 0
    // Predicated region
    $region2: #{tpu_custom_call.1} parent=1 // pred_check
      _
    $region3: #{tpu_custom_call.1} parent=1 // pred_check_branch
      %16 = sbr.rel (0) target = $region5
    $region4: #{tpu_custom_call.1} parent=1 // pred_region
      _
    $region5: #{tpu_custom_call.1} parent=1 // pred_fallthru
      _
    // Predicated region
    $region6: #{tpu_custom_call.1} parent=1 // pred_check
      _
    $region7: #{tpu_custom_call.1} parent=1 // pred_check_branch
      %18 = sbr.rel (0) target = $region9
    $region8: #{tpu_custom_call.1} parent=1 // pred_region
      _
    $region9: #{tpu_custom_call.1} parent=1 // pred_fallthru
      _
    // Predicated region
    $region10: #{tpu_custom_call.1} parent=1 // pred_check
      _
    $region11: #{tpu_custom_call.1} parent=1 // pred_check_branch
      %20 = sbr.rel (0) target = $region13
    $region12: #{tpu_custom_call.1} parent=1 // pred_region
      _
    $region13: #{tpu_custom_call.1} parent=1 // pred_fallthru
      _
    // Predicated region
    $region14: #{tpu_custom_call.1} parent=1 // pred_check
      _
    $region15: #{tpu_custom_call.1} parent=1 // pred_check_branch
      %22 = sbr.rel (0) target = $region17
    $region16: #{tpu_custom_call.1} parent=1 // pred_region
      _
    $region17: #{tpu_custom_call.1} parent=1 // pred_fallthru
      _
    // Predicated region
    $region18: #{tpu_custom_call.1} parent=1 // pred_check
      _
    $region19: #{tpu_custom_call.1} parent=1 // pred_check_branch
      %24 = sbr.rel (0) target = $region21
    $region20: #{tpu_custom_call.1} parent=1 // pred_region
      _
    $region21: #{tpu_custom_call.1} parent=1 // pred_fallthru
      _
    // Predicated region
    $region22: #{tpu_custom_call.1} parent=1 // pred_check
      _
    $region23: #{tpu_custom_call.1} parent=1 // pred_check_branch
      %26 = sbr.rel (0) target = $region25
    $region24: #{tpu_custom_call.1} parent=1 // pred_region
      _
    $region25: #{tpu_custom_call.1} parent=1 // pred_fallthru
      _
    // Predicated region
    $region26: #{tpu_custom_call.1} parent=1 // pred_check
      _
    $region27: #{tpu_custom_call.1} parent=1 // pred_check_branch
      %28 = sbr.rel (0) target = $region29
    $region28: #{tpu_custom_call.1} parent=1 // pred_region
      _
    $region29: #{tpu_custom_call.1} parent=1 // pred_fallthru
      _
    %v29 = vld [vmem:[%s0] sm:$0x3]
    %v30 = vld [vmem:[%s1] sm:$0xff]
    %v31 = vld [vmem:[%s1 + $0x8] sm:$0xff]
    %v32 = vld [vmem:[%s1 + $0x10] sm:$0xff]
    %v33 = vld [vmem:[%s1 + $0x18] sm:$0xff]
    %v34 = vld [vmem:[%s1 + $0x20] sm:$0xff]
    %v35 = vld [vmem:[%s1 + $0x28] sm:$0xff]
    %v36 = vld [vmem:[%s1 + $0x30] sm:$0xff]
    %v37 = vld [vmem:[%s1 + $0x38] sm:$0xff]
    %39 = vset.pattern.permute.xlu0 0
    %40 = vperm.xlu0 %39, %v30
    %v41 = vpop.permute.xlu0 %40
    %44 = vset.pattern.permute.xlu0 0
    %45 = vperm.xlu0 %44, %v31
    %v46 = vpop.permute.xlu0 %45
    %49 = vset.pattern.permute.xlu0 0
    %50 = vperm.xlu0 %49, %v32
    %v51 = vpop.permute.xlu0 %50
    %54 = vset.pattern.permute.xlu0 0
    %55 = vperm.xlu0 %54, %v33
    %v56 = vpop.permute.xlu0 %55
    %59 = vset.pattern.permute.xlu0 0
    %60 = vperm.xlu0 %59, %v34
    %v61 = vpop.permute.xlu0 %60
    %64 = vset.pattern.permute.xlu0 0
    %65 = vperm.xlu0 %64, %v35
    %v66 = vpop.permute.xlu0 %65
    %69 = vset.pattern.permute.xlu0 0
    %70 = vperm.xlu0 %69, %v36
    %v71 = vpop.permute.xlu0 %70
    %74 = vset.pattern.permute.xlu0 0
    %75 = vperm.xlu0 %74, %v37
    %v76 = vpop.permute.xlu0 %75
    %v78 = vlaneseq
    %v79 = vshrl.u32 %v78, 7
    %v80 = vsub.s32 0, %v79
    %v81 = vrot.slane %v29, %v80
    %v82 = vmul.f32 %v41, %v81
    %v83 = vmul.f32 %v46, %v81
    %v84 = vmul.f32 %v51, %v81
    %v85 = vmul.f32 %v56, %v81
    %v86 = vmul.f32 %v61, %v81
    %v87 = vmul.f32 %v66, %v81
    %v88 = vmul.f32 %v71, %v81
    %v89 = vmul.f32 %v76, %v81
    %90 = vset.pattern.permute.xlu0 1
    %91 = vperm.xlu0 %90, %v30
    %v92 = vpop.permute.xlu0 %91
    %94 = vset.pattern.permute.xlu0 1
    %95 = vperm.xlu0 %94, %v31
    %v96 = vpop.permute.xlu0 %95
    %98 = vset.pattern.permute.xlu0 1
    %99 = vperm.xlu0 %98, %v32
    %v100 = vpop.permute.xlu0 %99
    %102 = vset.pattern.permute.xlu0 1
    %103 = vperm.xlu0 %102, %v33
    %v104 = vpop.permute.xlu0 %103
    %106 = vset.pattern.permute.xlu0 1
    %107 = vperm.xlu0 %106, %v34
    %v108 = vpop.permute.xlu0 %107
    %110 = vset.pattern.permute.xlu0 1
    %111 = vperm.xlu0 %110, %v35
    %v112 = vpop.permute.xlu0 %111
    %114 = vset.pattern.permute.xlu0 1
    %115 = vperm.xlu0 %114, %v36
    %v116 = vpop.permute.xlu0 %115
    %118 = vset.pattern.permute.xlu0 1
    %119 = vperm.xlu0 %118, %v37
    %v120 = vpop.permute.xlu0 %119
    %v122 = vlaneseq
    %v123 = vshrl.u32 %v122, 7
    %v124 = vsub.s32 1, %v123
    %v125 = vrot.slane %v29, %v124
    %v126 = vmul.f32 %v92, %v125
    %v127 = vmul.f32 %v96, %v125
    %v128 = vmul.f32 %v100, %v125
    %v129 = vmul.f32 %v104, %v125
    %v130 = vmul.f32 %v108, %v125
    %v131 = vmul.f32 %v112, %v125
    %v132 = vmul.f32 %v116, %v125
    %v133 = vmul.f32 %v120, %v125
    %v134 = vadd.f32 %v82, %v126
    %v135 = vadd.f32 %v83, %v127
    %v136 = vadd.f32 %v84, %v128
    %v137 = vadd.f32 %v85, %v129
    %v138 = vadd.f32 %v86, %v130
    %v139 = vadd.f32 %v87, %v131
    %v140 = vadd.f32 %v88, %v132
    %v141 = vadd.f32 %v89, %v133
    %v142 = vld [vmem:[%s2] sm:$0xff]
    %v143 = vld [vmem:[%s2 + $0x8] sm:$0xff]
    %v144 = vld [vmem:[%s2 + $0x10] sm:$0xff]
    %v145 = vld [vmem:[%s2 + $0x18] sm:$0xff]
    %v146 = vld [vmem:[%s2 + $0x20] sm:$0xff]
    %v147 = vld [vmem:[%s2 + $0x28] sm:$0xff]
    %v148 = vld [vmem:[%s2 + $0x30] sm:$0xff]
    %v149 = vld [vmem:[%s2 + $0x38] sm:$0xff]
    %151 = vset.pattern.permute.xlu0 0
    %152 = vperm.xlu0 %151, %v142
    %v153 = vpop.permute.xlu0 %152
    %156 = vset.pattern.permute.xlu0 0
    %157 = vperm.xlu0 %156, %v143
    %v158 = vpop.permute.xlu0 %157
    %161 = vset.pattern.permute.xlu0 0
    %162 = vperm.xlu0 %161, %v144
    %v163 = vpop.permute.xlu0 %162
    %166 = vset.pattern.permute.xlu0 0
    %167 = vperm.xlu0 %166, %v145
    %v168 = vpop.permute.xlu0 %167
    %171 = vset.pattern.permute.xlu0 0
    %172 = vperm.xlu0 %171, %v146
    %v173 = vpop.permute.xlu0 %172
    %176 = vset.pattern.permute.xlu0 0
    %177 = vperm.xlu0 %176, %v147
    %v178 = vpop.permute.xlu0 %177
    %181 = vset.pattern.permute.xlu0 0
    %182 = vperm.xlu0 %181, %v148
    %v183 = vpop.permute.xlu0 %182
    %186 = vset.pattern.permute.xlu0 0
    %187 = vperm.xlu0 %186, %v149
    %v188 = vpop.permute.xlu0 %187
    %v190 = vadd.f32 %v134, %v153
    %v191 = vadd.f32 %v135, %v158
    %v192 = vadd.f32 %v136, %v163
    %v193 = vadd.f32 %v137, %v168
    %v194 = vadd.f32 %v138, %v173
    %v195 = vadd.f32 %v139, %v178
    %v196 = vadd.f32 %v140, %v183
    %v197 = vadd.f32 %v141, %v188
    %v198 = vmax.f32 %v190, 0.0
    %v199 = vmax.f32 %v191, 0.0
    %v200 = vmax.f32 %v192, 0.0
    %v201 = vmax.f32 %v193, 0.0
    %v202 = vmax.f32 %v194, 0.0
    %v203 = vmax.f32 %v195, 0.0
    %v204 = vmax.f32 %v196, 0.0
    %v205 = vmax.f32 %v197, 0.0
    %v206 = vld [vmem:[%s3] sm:$0xff]
    %v207 = vld [vmem:[%s3 + $0x8] sm:$0xff]
    %v208 = vld [vmem:[%s3 + $0x10] sm:$0xff]
    %v209 = vld [vmem:[%s3 + $0x18] sm:$0xff]
    %v210 = vld [vmem:[%s3 + $0x20] sm:$0xff]
    %v211 = vld [vmem:[%s3 + $0x28] sm:$0xff]
    %v212 = vld [vmem:[%s3 + $0x30] sm:$0xff]
    %v213 = vld [vmem:[%s3 + $0x38] sm:$0xff]
    %v214 = vld [vmem:[%s4] sm:$0xff]
    %v215 = vld [vmem:[%s4 + $0x8] sm:$0xff]
    %v216 = vld [vmem:[%s4 + $0x10] sm:$0xff]
    %v217 = vld [vmem:[%s4 + $0x18] sm:$0xff]
    %v218 = vld [vmem:[%s4 + $0x20] sm:$0xff]
    %v219 = vld [vmem:[%s4 + $0x28] sm:$0xff]
    %v220 = vld [vmem:[%s4 + $0x30] sm:$0xff]
    %v221 = vld [vmem:[%s4 + $0x38] sm:$0xff]
    %223 = vset.pattern.permute.xlu0 0
    %224 = vperm.xlu0 %223, %v214
    %v225 = vpop.permute.xlu0 %224
    %228 = vset.pattern.permute.xlu0 0
    %229 = vperm.xlu0 %228, %v215
    %v230 = vpop.permute.xlu0 %229
    %233 = vset.pattern.permute.xlu0 0
    %234 = vperm.xlu0 %233, %v216
    %v235 = vpop.permute.xlu0 %234
    %238 = vset.pattern.permute.xlu0 0
    %239 = vperm.xlu0 %238, %v217
    %v240 = vpop.permute.xlu0 %239
    %243 = vset.pattern.permute.xlu0 0
    %244 = vperm.xlu0 %243, %v218
    %v245 = vpop.permute.xlu0 %244
    %248 = vset.pattern.permute.xlu0 0
    %249 = vperm.xlu0 %248, %v219
    %v250 = vpop.permute.xlu0 %249
    %253 = vset.pattern.permute.xlu0 0
    %254 = vperm.xlu0 %253, %v220
    %v255 = vpop.permute.xlu0 %254
    %258 = vset.pattern.permute.xlu0 0
    %259 = vperm.xlu0 %258, %v221
    %v260 = vpop.permute.xlu0 %259
    %vm262 = vcmask 523264
    %v264 = vsel %vm262, %v206, 0
    %v267 = vsel %vm262, %v207, 0
    %v270 = vsel %vm262, %v208, 0
    %v273 = vsel %vm262, %v209, 0
    %v276 = vsel %vm262, %v210, 0
    %v279 = vsel %vm262, %v211, 0
    %v282 = vsel %vm262, %v212, 0
    %v285 = vsel %vm262, %v213, 0
    %287 = vmatprep.subr.mxu0 0.0
    %288 = vmatpush1.msra.mxu0 %v198
    %289 = vmatprep.subr.mxu0 0.0
    %290 = vmatpush1.msra.mxu0 %v199
    %291 = vmatprep.subr.mxu0 0.0
    %292 = vmatpush1.msra.mxu0 %v200
    %293 = vmatprep.subr.mxu0 0.0
    %294 = vmatpush1.msra.mxu0 %v201
    %295 = vmatprep.subr.mxu0 0.0
    %296 = vmatpush1.msra.mxu0 %v202
    %297 = vmatprep.subr.mxu0 0.0
    %298 = vmatpush1.msra.mxu0 %v203
    %299 = vmatprep.subr.mxu0 0.0
    %300 = vmatpush1.msra.mxu0 %v204
    %301 = vmatprep.subr.mxu0 0.0
    %302 = vmatpush1.msra.mxu0 %v205
    %303 = vmatprep.subr.mxu0 0.0
    %304 = vmatpush1.msra.mxu0 0.0
    %305 = vmatprep.subr.mxu0 0.0
    %306 = vmatpush1.msra.mxu0 0.0
    %307 = vmatprep.subr.mxu0 0.0
    %308 = vmatpush1.msra.mxu0 0.0
    %309 = vmatprep.subr.mxu0 0.0
    %310 = vmatpush1.msra.mxu0 0.0
    %311 = vmatprep.subr.mxu0 0.0
    %312 = vmatpush1.msra.mxu0 0.0
    %313 = vmatprep.subr.mxu0 0.0
    %314 = vmatpush1.msra.mxu0 0.0
    %315 = vmatprep.subr.mxu0 0.0
    %316 = vmatpush1.msra.mxu0 0.0
    %317 = vmatprep.subr.mxu0 0.0
    %318 = vmatpush1.msra.mxu0 0.0
    %319 = vmatprep.subr.mxu0 0.0
    %320 = vmatpush1.msra.mxu0 0.0
    %321 = vmatprep.subr.mxu0 0.0
    %322 = vmatpush1.msra.mxu0 0.0
    %323 = vmatprep.subr.mxu0 0.0
    %324 = vmatpush1.msra.mxu0 0.0
    %325 = vmatprep.subr.mxu0 0.0
    %326 = vmatpush1.msra.mxu0 0.0
    %327 = vmatprep.subr.mxu0 0.0
    %328 = vmatpush1.msra.mxu0 0.0
    %329 = vmatprep.subr.mxu0 0.0
    %330 = vmatpush1.msra.mxu0 0.0
    %331 = vmatprep.subr.mxu0 0.0
    %332 = vmatpush1.msra.mxu0 0.0
    %333 = vmatprep.subr.mxu0 0.0
    %334 = vmatpush1.msra.mxu0 0.0
    %335 = vmatprep.subr.mxu0 0.0
    %336 = vmatpush1.msra.mxu0 0.0
    %337 = vmatprep.subr.mxu0 0.0
    %338 = vmatpush1.msra.mxu0 0.0
    %339 = vmatprep.subr.mxu0 0.0
    %340 = vmatpush1.msra.mxu0 0.0
    %341 = vmatprep.subr.mxu0 0.0
    %342 = vmatpush1.msra.mxu0 0.0
    %343 = vmatprep.subr.mxu0 0.0
    %344 = vmatpush1.msra.mxu0 0.0
    %345 = vmatprep.subr.mxu0 0.0
    %346 = vmatpush1.msra.mxu0 0.0
    %347 = vmatprep.subr.mxu0 0.0
    %348 = vmatpush1.msra.mxu0 0.0
    %349 = vmatprep.subr.mxu0 0.0
    %350 = vmatpush1.msra.mxu0 0.0
    %351 = vmatprep.mubr.f32.mxu0 0.0
    %352 = vmatmul.mubr.f32.gmra.mrb[0].mxu0 %v264
    %v353 = vpop.f32.mrb[0].mxu0
    %v354 = vadd.f32 %v225, %v353
    %v355 = vpop.f32.mrb[0].mxu0
    %356 = vmatprep.mubr.f32.mxu0 0.0
    %357 = vmatmul.mubr.f32.gmra.mrb[0].mxu0 %v267
    %v358 = vpop.f32.mrb[0].mxu0
    %v359 = vadd.f32 %v230, %v358
    %v360 = vpop.f32.mrb[0].mxu0
    %361 = vmatprep.mubr.f32.mxu0 0.0
    %362 = vmatmul.mubr.f32.gmra.mrb[0].mxu0 %v270
    %v363 = vpop.f32.mrb[0].mxu0
    %v364 = vadd.f32 %v235, %v363
    %v365 = vpop.f32.mrb[0].mxu0
    %366 = vmatprep.mubr.f32.mxu0 0.0
    %367 = vmatmul.mubr.f32.gmra.mrb[0].mxu0 %v273
    %v368 = vpop.f32.mrb[0].mxu0
    %v369 = vadd.f32 %v240, %v368
    %v370 = vpop.f32.mrb[0].mxu0
    %371 = vmatprep.mubr.f32.mxu0 0.0
    %372 = vmatmul.mubr.f32.gmra.mrb[0].mxu0 %v276
    %v373 = vpop.f32.mrb[0].mxu0
    %v374 = vadd.f32 %v245, %v373
    %v375 = vpop.f32.mrb[0].mxu0
    %376 = vmatprep.mubr.f32.mxu0 0.0
    %377 = vmatmul.mubr.f32.gmra.mrb[0].mxu0 %v279
    %v378 = vpop.f32.mrb[0].mxu0
    %v379 = vadd.f32 %v250, %v378
    %v380 = vpop.f32.mrb[0].mxu0
    %381 = vmatprep.mubr.f32.mxu0 0.0
    %382 = vmatmul.mubr.f32.gmra.mrb[0].mxu0 %v282
    %v383 = vpop.f32.mrb[0].mxu0
    %v384 = vadd.f32 %v255, %v383
    %v385 = vpop.f32.mrb[0].mxu0
    %386 = vmatprep.mubr.f32.mxu0 0.0
    %387 = vmatmul.mubr.f32.gmra.mrb[0].mxu0 %v285
    %v388 = vpop.f32.mrb[0].mxu0
    %v389 = vadd.f32 %v260, %v388
    %v390 = vpop.f32.mrb[0].mxu0
    %391 = vdwg.mxu0
    %v392 = vmax.f32 %v354, 0.0
    %v393 = vmax.f32 %v359, 0.0
    %v394 = vmax.f32 %v364, 0.0
    %v395 = vmax.f32 %v369, 0.0
    %v396 = vmax.f32 %v374, 0.0
    %v397 = vmax.f32 %v379, 0.0
    %v398 = vmax.f32 %v384, 0.0
    %v399 = vmax.f32 %v389, 0.0
    %v400 = vld [vmem:[%s5] sm:$0x1]
    %401 = vxpose.xlu0.b32.start [1/16] %v400, 128
    %402 = vxpose.xlu0.b32.cont [2/16] 0.0, 128
    %403 = vxpose.xlu0.b32.cont [3/16] 0.0, 128
    %404 = vxpose.xlu0.b32.cont [4/16] 0.0, 128
    %405 = vxpose.xlu0.b32.cont [5/16] 0.0, 128
    %406 = vxpose.xlu0.b32.cont [6/16] 0.0, 128
    %407 = vxpose.xlu0.b32.cont [7/16] 0.0, 128
    %408 = vxpose.xlu0.b32.cont [8/16] 0.0, 128
    %409 = vxpose.xlu0.b32.cont [9/16] 0.0, 128
    %410 = vxpose.xlu0.b32.cont [10/16] 0.0, 128
    %411 = vxpose.xlu0.b32.cont [11/16] 0.0, 128
    %412 = vxpose.xlu0.b32.cont [12/16] 0.0, 128
    %413 = vxpose.xlu0.b32.cont [13/16] 0.0, 128
    %414 = vxpose.xlu0.b32.cont [14/16] 0.0, 128
    %415 = vxpose.xlu0.b32.cont [15/16] 0.0, 128
    %416 = vxpose.xlu0.b32.end [16/16] 0.0, 128
    %v417 = vpop.trf.xlu0
    %v418 = vpop.trf.xlu0
    %v419 = vpop.trf.xlu0
    %v420 = vpop.trf.xlu0
    %v421 = vpop.trf.xlu0
    %v422 = vpop.trf.xlu0
    %v423 = vpop.trf.xlu0
    %v424 = vpop.trf.xlu0
    %v425 = vpop.trf.xlu0
    %v426 = vpop.trf.xlu0
    %v427 = vpop.trf.xlu0
    %v428 = vpop.trf.xlu0
    %v429 = vpop.trf.xlu0
    %v430 = vpop.trf.xlu0
    %v431 = vpop.trf.xlu0
    %v432 = vpop.trf.xlu0
    %434 = vset.pattern.permute.xlu0 0
    %435 = vperm.xlu0 %434, %v417
    %v436 = vpop.permute.xlu0 %435
    %439 = vset.pattern.permute.xlu0 0
    %440 = vperm.xlu0 %439, %v418
    %v441 = vpop.permute.xlu0 %440
    %444 = vset.pattern.permute.xlu0 0
    %445 = vperm.xlu0 %444, %v419
    %v446 = vpop.permute.xlu0 %445
    %449 = vset.pattern.permute.xlu0 0
    %450 = vperm.xlu0 %449, %v420
    %v451 = vpop.permute.xlu0 %450
    %454 = vset.pattern.permute.xlu0 0
    %455 = vperm.xlu0 %454, %v421
    %v456 = vpop.permute.xlu0 %455
    %459 = vset.pattern.permute.xlu0 0
    %460 = vperm.xlu0 %459, %v422
    %v461 = vpop.permute.xlu0 %460
    %464 = vset.pattern.permute.xlu0 0
    %465 = vperm.xlu0 %464, %v423
    %v466 = vpop.permute.xlu0 %465
    %469 = vset.pattern.permute.xlu0 0
    %470 = vperm.xlu0 %469, %v424
    %v471 = vpop.permute.xlu0 %470
    %v473 = vmul.f32 %v436, %v392
    %v474 = vmul.f32 %v441, %v393
    %v475 = vmul.f32 %v446, %v394
    %v476 = vmul.f32 %v451, %v395
    %v477 = vmul.f32 %v456, %v396
    %v478 = vmul.f32 %v461, %v397
    %v479 = vmul.f32 %v466, %v398
    %v480 = vmul.f32 %v471, %v399
    %v481 = vadd.f32 %v473, %v474
    %v482 = vadd.f32 %v481, %v475
    %v483 = vadd.f32 %v482, %v476
    %v484 = vadd.f32 %v483, %v477
    %v485 = vadd.f32 %v484, %v478
    %v486 = vadd.f32 %v485, %v479
    %v487 = vadd.f32 %v486, %v480
    %v488 = vrot.slane %v487, 4
    %v489 = vadd.f32 %v487, %v488
    %v490 = vrot.slane %v489, 2
    %v491 = vadd.f32 %v489, %v490
    %v492 = vrot.slane %v491, 1
    %v493 = vadd.f32 %v491, %v492
    %v494 = vld [vmem:[#allocation2] sm:$0x1]
    %496 = vset.pattern.permute.xlu0 0
    %497 = vperm.xlu0 %496, %v494
    %v498 = vpop.permute.xlu0 %497
    %v500 = vlaneseq
    %v501 = vshrl.u32 %v500, 7
    %v502 = vsub.s32 0, %v501
    %v503 = vrot.slane %v498, %v502
    %v504 = vadd.f32 %v493, %v503
    %505 = vst [vmem:[#allocation3] sm:$0x1] %v504
    // Predicated region
    $region30: #{tpu_custom_call.1} parent=1 // pred_check
      _
    $region31: #{tpu_custom_call.1} parent=1 // pred_check_branch
      %507 = sbr.rel (0) target = $region33
    $region32: #{tpu_custom_call.1} parent=1 // pred_region
      %s509 = ssub.s32 16, 16
      %510 = vsyncadd [#allocation4], %s509
      %s512 = sshll.u32 [#allocation3], 4
      %s513 = int_to_ptr.vmem [resolvable:$true] %s512
      %515 = dma.vmem_to_hbm [thread:$0]  %s513, 16, %s7, [#allocation4]
    $region33: #{tpu_custom_call.1} parent=1 // pred_fallthru
      _
    // Predicated region
    $region34: #{tpu_custom_call.1} parent=1 // pred_check
      _
    $region35: #{tpu_custom_call.1} parent=1 // pred_check_branch
      %517 = sbr.rel (0) target = $region37
    $region36: #{tpu_custom_call.1} parent=1 // pred_region
      %518 = dma.done [#allocation4], 16
    $region37: #{tpu_custom_call.1} parent=1 // pred_fallthru
      _
    %519 = vsyncpa [#allocation4], 1

</llo_original>
